<compile_context>
chip_gen: v5e
topology: v5e:2x2
jax: 0.10.0
libtpu: 0.0.40
codegen_flags: <defaults>
</compile_context>

<pallas_src>
import jax
import jax.numpy as jnp
from jax.experimental import pallas as pl
from jax.experimental.pallas import tpu as pltpu


def _forget_kernel(x_ref, w_ref, b_ref, o_ref):
    # x_ref: (tm, D)   w_ref: (1, D) resident   b_ref: SMEM (1,) f32   o_ref: (tm, D)
    w = w_ref[...].astype(jnp.float32)                        # (1, D), broadcasts over rows
    # Linear(feature_dim, 1): per-row dot with the single weight row.
    # VPU multiply + XLU lane reduce in f32; only the (tm, 1) stats stay f32-resident.
    logits = jnp.sum(x_ref[...].astype(jnp.float32) * w,
                     axis=-1, keepdims=True) + b_ref[0]       # (tm, 1) f32
    gate = jax.nn.sigmoid(logits)                             # (tm, 1) f32
    # Second read of x_ref for the bulk multiply; multiply with the f32 gate
    # and cast only at the store (accuracy for narrow dtypes, same BW cost).
    o_ref[...] = (x_ref[...].astype(jnp.float32) * gate).astype(o_ref.dtype)


def _sublane(itemsize):
    # dtype-native sublane multiple: 8 for 4-byte, 16 for 2-byte, 32 for 1-byte
    return {4: 8, 2: 16, 1: 32}.get(int(itemsize), 8)


def _round_up(x, m):
    return ((x + m - 1) // m) * m


def _round_down(x, m):
    return max(m, (x // m) * m)


def _num_tensorcores():
    # v7x has 2 TensorCores per chip; v5e/v6e have 1. Unknown -> assume 1 (no split).
    try:
        kind = jax.devices()[0].device_kind.lower()
    except Exception:
        return 1
    return 2 if "v7" in kind else 1


def _choose_tm(B, D, itemsize, *, tm_max=2048, vmem_budget=12 * 1024 * 1024,
               num_tc=None):
    """Row-tile heuristic for a bandwidth-bound per-row op.

    Budget covers double-buffered x-in + out tiles, after subtracting the
    (sublane-padded, double-buffered) weight block. 12 MiB keeps us inside
    every generation's default scoped-VMEM limit and in the 1-6 MiB/tile
    roofline sweet spot.
    """
    if num_tc is None:
        num_tc = _num_tensorcores()
    sub = _sublane(itemsize)
    row_bytes = D * itemsize
    budget = max(4 * sub * row_bytes, vmem_budget - 2 * sub * row_bytes)
    cap = max(sub, budget // (4 * row_bytes))
    tm = _round_down(min(tm_max, cap), sub)
    if tm >= B:
        # Single block covering the whole array: block_shape == array shape, so
        # no (8,128) divisibility constraint and no padding of any kind.
        return B
    if num_tc > 1:
        # v7x: aim for >=4 grid steps (>=2 per TensorCore) so the software
        # pipeline overlaps prefetch/writeback and both TCs stay busy, but
        # never shrink a tile below ~1 MiB (already ~85% of HBM roofline).
        min_rows = _round_up(max(1, (1 << 20) // row_bytes), sub)
        candidate = _round_up(pl.cdiv(B, 2 * num_tc), sub)
        candidate = max(candidate, min_rows)
        tm = min(tm, candidate)
    return tm


def controlled_forgetting(x, w, b, *, tm=None):
    """x: (B, D), w: (1, D), b: (1,) -> (B, D); matches sigmoid(x @ w.T + b) * x."""
    B, D = x.shape
    itemsize = jnp.dtype(x.dtype).itemsize
    if tm is None:
        tm = _choose_tm(B, D, itemsize)
    tm = min(tm, B)
    grid_b = pl.cdiv(B, tm)           # non-divisible last block handled by Pallas

    b_smem = b.reshape(1).astype(jnp.float32)

    # Explicit scoped-VMEM limit: double-buffered x/out tiles + sublane-padded,
    # double-buffered weight block + room for in-kernel f32 temps. Capped at
    # 48 MiB so we never overshoot v7x's 64 MiB physical VMEM.
    row_bytes = D * itemsize
    working_set = 4 * tm * row_bytes + 2 * _sublane(itemsize) * row_bytes
    headroom = 2 * tm * D * 4 + (2 << 20)
    vmem_limit = int(min(48 << 20, max(16 << 20, working_set + headroom)))

    cost = pl.CostEstimate(
        flops=3 * B * D,                                   # dot + gate multiply
        transcendentals=B,                                 # one sigmoid per row
        bytes_accessed=2 * B * D * itemsize + D * itemsize + 4,
    )

    return pl.pallas_call(
        _forget_kernel,
        out_shape=jax.ShapeDtypeStruct((B, D), x.dtype),
        grid_spec=pltpu.PrefetchScalarGridSpec(
            num_scalar_prefetch=0,
            grid=(grid_b,),
            in_specs=[
                pl.BlockSpec((tm, D), lambda i: (i, 0)),            # x tile (streamed)
                pl.BlockSpec((1, D), lambda i: (0, 0)),             # gate weight (resident)
                pl.BlockSpec(memory_space=pltpu.MemorySpace.SMEM),  # gate bias scalar
            ],
            out_specs=pl.BlockSpec((tm, D), lambda i: (i, 0)),
        ),
        compiler_params=pltpu.CompilerParams(
            dimension_semantics=("parallel",),
            vmem_limit_bytes=vmem_limit),
        cost_estimate=cost,
    )(x, w, b_smem)


def reference(x, w, b):
    gate = jax.nn.sigmoid(x @ w.T + b)   # (B, 1)
    return x * gate


if __name__ == "__main__":
    memory_size = 16
    feature_dim = 128
    batch = 8

    key = jax.random.PRNGKey(0)
    k_mem, k_w, k_b, k_x, k_x2, k_x3 = jax.random.split(key, 6)

    # Parameters (`memory` is unused in forward(); kept only for shape parity).
    memory = jax.random.normal(k_mem, (memory_size, feature_dim), jnp.float32)
    # nn.Linear(feature_dim, 1): weight (1, feature_dim), bias (1,)
    bound = 1.0 / (feature_dim ** 0.5)
    w = jax.random.uniform(k_w, (1, feature_dim), jnp.float32, -bound, bound)
    b = jax.random.uniform(k_b, (1,), jnp.float32, -bound, bound)

    # Small case (single full-array block).
    x = jax.random.normal(k_x, (batch, feature_dim), jnp.float32)
    out = jax.block_until_ready(controlled_forgetting(x, w, b))
    ref = reference(x, w, b)
    assert out.shape == x.shape
    assert jnp.allclose(out, ref, atol=1e-5, rtol=1e-5)

    # Odd batch, still a single full-array block (block_shape == array shape).
    x2 = jax.random.normal(k_x2, (20, feature_dim), jnp.float32)
    out2 = jax.block_until_ready(controlled_forgetting(x2, w, b))
    ref2 = reference(x2, w, b)
    assert out2.shape == x2.shape
    assert jnp.allclose(out2, ref2, atol=1e-5, rtol=1e-5)

    # Multi-block ragged case: force a small tile so grid=3 with a partial last
    # block — exercises the pad-free non-divisible-grid path.
    x3 = jax.random.normal(k_x3, (300, feature_dim), jnp.float32)
    out3 = jax.block_until_ready(controlled_forgetting(x3, w, b, tm=128))
    ref3 = reference(x3, w, b)
    assert out3.shape == x3.shape
    assert jnp.allclose(out3, ref3, atol=1e-5, rtol=1e-5)

    print("KERNEL_OK")
</pallas_src>

<mosaic_0001>
module attributes {stable_mosaic.version = 11 : i64} {
  func.func @_forget_kernel(%arg0: i32, %arg1: memref<8x128xf32, #tpu.memory_space<vmem>>, %arg2: memref<1x128xf32, #tpu.memory_space<vmem>>, %arg3: memref<1xf32, #tpu.memory_space<smem>>, %arg4: memref<8x128xf32, #tpu.memory_space<vmem>>) attributes {dimension_semantics = [#tpu.dimension_semantics<parallel>], iteration_bounds = array<i64: 1>, scalar_prefetch = 0 : i64, scratch_operands = 0 : i64, tpu.core_type = #tpu.core_type<tc>, window_params = [{transform_indices = @transform_0, window_bounds = array<i64: 8, 128>}, {pipeline_mode = #tpu.pipeline_mode<synchronous>, transform_indices = @transform_1, window_bounds = array<i64: 1, 128>}, {transform_indices = @transform_2, window_bounds = array<i64: 1>}, {transform_indices = @transform_3, window_bounds = array<i64: 8, 128>}]} {
    %c0 = arith.constant 0 : index
    %c0_0 = arith.constant 0 : index
    %0 = vector.load %arg2[%c0, %c0_0] : memref<1x128xf32, #tpu.memory_space<vmem>>, vector<1x128xf32>
    %c0_1 = arith.constant 0 : index
    %c0_2 = arith.constant 0 : index
    %1 = vector.load %arg1[%c0_1, %c0_2] : memref<8x128xf32, #tpu.memory_space<vmem>>, vector<8x128xf32>
    %2 = vector.broadcast %0 : vector<1x128xf32> to vector<8x128xf32>
    %3 = arith.mulf %1, %2 : vector<8x128xf32>
    %cst = arith.constant dense<0.000000e+00> : vector<8xf32>
    %4 = vector.multi_reduction <add>, %3, %cst [1] : vector<8x128xf32> to vector<8xf32>
    %5 = vector.shape_cast %4 : vector<8xf32> to vector<8x1xf32>
    %c0_3 = arith.constant 0 : index
    %6 = memref.load %arg3[%c0_3] : memref<1xf32, #tpu.memory_space<smem>>
    %7 = vector.broadcast %6 : f32 to vector<8x1xf32>
    %8 = arith.addf %5, %7 : vector<8x1xf32>
    %9 = arith.negf %8 : vector<8x1xf32>
    %10 = math.exp %9 : vector<8x1xf32>
    %cst_4 = arith.constant 1.000000e+00 : f32
    %11 = vector.broadcast %cst_4 : f32 to vector<8x1xf32>
    %12 = arith.addf %11, %10 : vector<8x1xf32>
    %13 = arith.divf %11, %12 : vector<8x1xf32>
    %c0_5 = arith.constant 0 : index
    %c0_6 = arith.constant 0 : index
    %14 = vector.load %arg1[%c0_5, %c0_6] : memref<8x128xf32, #tpu.memory_space<vmem>>, vector<8x128xf32>
    %15 = vector.broadcast %13 : vector<8x1xf32> to vector<8x128xf32>
    %16 = arith.mulf %14, %15 : vector<8x128xf32>
    %c0_7 = arith.constant 0 : index
    %c0_8 = arith.constant 0 : index
    %17 = vector.load %arg4[%c0_7, %c0_8] : memref<8x128xf32, #tpu.memory_space<vmem>>, vector<8x128xf32>
    tpu.vector_store %arg4[%c0_7, %c0_8], %16 {strides = array<i32>} : memref<8x128xf32, #tpu.memory_space<vmem>>, vector<8x128xf32>,
    return
  }
  func.func @transform_0(%arg0: i32) -> (i32, i32) {
    %c0_i32 = arith.constant 0 : i32
    %c0_i32_0 = arith.constant 0 : i32
    return %arg0, %c0_i32 : i32, i32
  }
  func.func @transform_1(%arg0: i32) -> (i32, i32) {
    %c0_i32 = arith.constant 0 : i32
    %c0_i32_0 = arith.constant 0 : i32
    %c0_i32_1 = arith.constant 0 : i32
    return %c0_i32, %c0_i32_0 : i32, i32
  }
  func.func @transform_2(%arg0: i32) -> i32 {
    %c0_i32 = arith.constant 0 : i32
    %c0_i32_0 = arith.constant 0 : i32
    return %c0_i32 : i32
  }
  func.func @transform_3(%arg0: i32) -> (i32, i32) {
    %c0_i32 = arith.constant 0 : i32
    %c0_i32_0 = arith.constant 0 : i32
    return %arg0, %c0_i32 : i32, i32
  }
}

</mosaic_0001>

<llo_original>
// kernel: tpu_custom_call.1
$region0: #{tpu_custom_call.1}
  #allocation0 [shape = 'u32[]', space=smem, size = 0x4, offset = 0x4, fixed_abs, tag = 'smem constant byte address 0x4 - core index']
  #allocation1 [shape = 'u32[72,128]{1,0:T(1,128)}', space=vmem, size = 0x9000, scoped, tag = 'internal scratch']
  #allocation2 [shape = 'f32[1]{0:T(128)S(6)}', space=smem, size = 0x200, scoped, tag = 'scoped memory for tpu_custom_call.1']
  %s0 = inlined_call_operand.hbm [shape: f32[8,128], index: 0, kind: input, shape index: {}]
  %s1 = inlined_call_operand.vmem [shape: f32[1,128], index: 1, kind: input, shape index: {}]
  %s2 = inlined_call_operand.<no memory space> [shape: f32[1], index: 2, kind: input, shape index: {}]
  %s3 = inlined_call_operand.hbm [shape: f32[8,128], index: 3, kind: output, shape index: {}]
  %s4 = sld [smem:[#allocation0]]
  $region26: #{tpu_custom_call.1} parent=0
    _
  %s6 = ssub.s32 1, %s4
  %s7 = scalar_select 0, %s6, %s4
  %8 = sst [smem:[#allocation2]] %s2
  $region1: #{tpu_custom_call.1} parent=0
    #allocation3 [shape = 'u8[4096]{0}', space=vmem, size = 0x1000, scoped, tag = 'input window, operand 0, single buffered']
    #allocation4 [shape = 's32[1]{0}', space=sflag, size = 0x4, scoped, tag = 'scoped memory for tpu_custom_call.1']
    #allocation5 [shape = 's32[1]{0}', space=sflag, size = 0x4, scoped, tag = 'scoped memory for tpu_custom_call.1']
    #allocation6 [shape = 'u8[4096]{0}', space=vmem, size = 0x1000, scoped, tag = 'output window, operand 0, single buffered']
    %9 = vsyncpa [#allocation4], 0
    %10 = vsyncpa [#allocation5], 0
    // Predicated region
    $region2: #{tpu_custom_call.1} parent=1 // pred_check
      _
    $region3: #{tpu_custom_call.1} parent=1 // pred_check_branch
      %12 = sbr.rel (0) target = $region5
    $region4: #{tpu_custom_call.1} parent=1 // pred_region
      %14 = vsyncadd [#allocation4], 0
      %s16 = sshll.u32 %s0, 4
      %s17 = int_to_ptr.hbm [resolvable:$true] %s16
      %s18 = sshll.u32 [#allocation3], 4
      %s19 = int_to_ptr.vmem [resolvable:$true] %s18
      %21 = dma.hbm_to_vmem [thread:$0]  %s17, 128, %s19, [#allocation4]
    $region5: #{tpu_custom_call.1} parent=1 // pred_fallthru
      _
    // Predicated region
    $region6: #{tpu_custom_call.1} parent=1 // pred_check
      _
    $region7: #{tpu_custom_call.1} parent=1 // pred_check_branch
      %23 = sbr.rel (0) target = $region9
    $region8: #{tpu_custom_call.1} parent=1 // pred_region
      _
    $region9: #{tpu_custom_call.1} parent=1 // pred_fallthru
      _
    // Predicated region
    $region10: #{tpu_custom_call.1} parent=1 // pred_check
      _
    $region11: #{tpu_custom_call.1} parent=1 // pred_check_branch
      %25 = sbr.rel (0) target = $region13
    $region12: #{tpu_custom_call.1} parent=1 // pred_region
      _
    $region13: #{tpu_custom_call.1} parent=1 // pred_fallthru
      _
    // Predicated region
    $region14: #{tpu_custom_call.1} parent=1 // pred_check
      _
    $region15: #{tpu_custom_call.1} parent=1 // pred_check_branch
      %27 = sbr.rel (0) target = $region17
    $region16: #{tpu_custom_call.1} parent=1 // pred_region
      %29 = dma.done [#allocation4], 128
    $region17: #{tpu_custom_call.1} parent=1 // pred_fallthru
      _
    %v30 = vld [vmem:[%s1] sm:$0x1]
    %v31 = vld [vmem:[#allocation3] sm:$0xff]
    %v33 = vperm.slane %v30, 0
    %v35 = vmul.f32 %v31, %v33
    %36 = vadd.xlane.f32.xlu0 %v35
    %v37 = vpop.xlane.xlu0 %36
    %s38 = sld [smem:[#allocation2]]
    %v39 = vstv %s38
    %v40 = vadd.f32 %v37, %v39
    %v41 = vxor.u32 %v40, 2147483648
    %v42 = vmul.f32 %v41, 1.442695
    %v43 = vpow.pop %v42
    %v44 = vadd.f32 %v43, 1.0
    %v45 = vrcp.pop %v44
    %v46 = vmul.f32 %v44, %v45
    %v47 = vsub.f32 1.0, %v46
    %v48 = vmul.f32 %v45, %v47
    %v49 = vadd.f32 %v45, %v48
    %vm50 = vweird.f32 %v44
    %vm51 = vweird.f32 %v45
    %vm52 = vmor %vm50, %vm51
    %v53 = vsel %vm52, %v45, %v49
    %v54 = vand.u32 2147483647, %v44
    %vm55 = vcmp.eq.f32.partialorder %v54, 8.507059e+37
    %v56 = vand.u32 %v44, 2147483648
    %v57 = vor.u32 1.1754944e-38, %v56
    %v58 = vsel %vm55, %v57, %v53
    %v59 = vmul.f32 1.0, %v58
    %v60 = vmul.f32 %v31, %v59
    %61 = vst [vmem:[#allocation6] sm:$0xff] %v60
    // Predicated region
    $region18: #{tpu_custom_call.1} parent=1 // pred_check
      _
    $region19: #{tpu_custom_call.1} parent=1 // pred_check_branch
      %63 = sbr.rel (0) target = $region21
    $region20: #{tpu_custom_call.1} parent=1 // pred_region
      %65 = vsyncadd [#allocation5], 0
      %s67 = sshll.u32 [#allocation6], 4
      %s68 = int_to_ptr.vmem [resolvable:$true] %s67
      %s69 = sshll.u32 %s3, 4
      %s70 = int_to_ptr.hbm [resolvable:$true] %s69
      %72 = dma.vmem_to_hbm [thread:$0]  %s68, 128, %s70, [#allocation5]
    $region21: #{tpu_custom_call.1} parent=1 // pred_fallthru
      _
    // Predicated region
    $region22: #{tpu_custom_call.1} parent=1 // pred_check
      _
    $region23: #{tpu_custom_call.1} parent=1 // pred_check_branch
      %74 = sbr.rel (0) target = $region25
    $region24: #{tpu_custom_call.1} parent=1 // pred_region
      %76 = dma.done [#allocation5], 128
    $region25: #{tpu_custom_call.1} parent=1 // pred_fallthru
      _
    %77 = vsyncpa [#allocation4], 1
    %78 = vsyncpa [#allocation5], 1

</llo_original>
